<compile_context>
chip_gen: v5e
topology: v5e:2x2
jax: 0.10.0
libtpu: 0.0.40
codegen_flags: <defaults>
</compile_context>

<pallas_src>
import functools

import jax
import jax.numpy as jnp
from jax import lax
from jax.experimental import pallas as pl
from jax.experimental.pallas import tpu as pltpu

F32_EPS = float(jnp.finfo(jnp.float32).eps)  # torch.finfo(torch.float32).eps


def spearman_loss_kernel(rows_ref, cols_ref, out_ref, *, n: int, beta: float):
    # rows_ref: (2, N)  row 0 = mem_pred, row 1 = mem_gt   (values on lanes)
    # cols_ref: (N, 2)  col 0 = mem_pred, col 1 = mem_gt   (values on sublanes)
    x_row = rows_ref[0:1, :]             # (1, N): x[j]
    g_row = rows_ref[1:2, :]             # (1, N): g[j]
    cols = cols_ref[...]                 # (N, 2)
    x_col = cols[:, 0:1]                 # (N, 1): x[i]
    g_col = cols[:, 1:2]                 # (N, 1): g[i]

    nn = n * n

    # ---- (1) scale = 6.8 / (std + eps); std is the unbiased std over all
    # N*N entries of the zero-filled strict-upper-triangle of
    # diff[i, j] = x[j] - x[i].  Single pass: sum and sum-of-squares.
    upper = (lax.broadcasted_iota(jnp.int32, (n, n), 1)
             > lax.broadcasted_iota(jnp.int32, (n, n), 0))
    masked = jnp.where(upper, x_row - x_col, 0.0)          # (N, N)
    sum_m = jnp.sum(masked)
    sum_sq = jnp.sum(masked * masked)
    var = (sum_sq - sum_m * sum_m / nn) / (nn - 1)
    std = jnp.sqrt(jnp.maximum(var, 0.0))                  # clamp: no sqrt(neg)
    std = jnp.where(jnp.isnan(std), F32_EPS, std)          # mirror module fixup
    half_scale = 0.5 * (6.8 / (std + F32_EPS))

    # ---- (2) soft rank of mem_pred.
    # sigmoid(scale*diff) = 0.5*tanh(0.5*scale*diff) + 0.5 (single EUP op).
    # The diagonal contributes exactly sigmoid(0) = 0.5, so summing over ALL j
    # and adding (1 - 0.5) reproduces
    #   sum_{j>i} sigmoid(scale*(x[j]-x[i])) + sum_{j<i} sigmoid(scale*(x[j]-x[i])) + 1.
    diff = x_row - x_col                                   # (N, N)
    s = 0.5 * jnp.tanh(diff * half_scale) + 0.5            # (N, N)
    rank_pred = (jnp.sum(s, axis=1, keepdims=True) + 0.5) / n        # (N, 1)

    # ---- (3) rank of mem_gt: (N - #smaller)/N; ties broken by original index
    # (equals double argsort for distinct values, stable-sort convention).
    lower = (lax.broadcasted_iota(jnp.int32, (n, n), 1)
             < lax.broadcasted_iota(jnp.int32, (n, n), 0))
    smaller = jnp.logical_or(g_row < g_col,
                             jnp.logical_and(g_row == g_col, lower))
    count = jnp.sum(jnp.where(smaller, 1.0, 0.0), axis=1, keepdims=True)
    rank_gt = (jnp.float32(n) - count) / n                 # (N, 1)

    # ---- (4) loss = MSE(rank_pred, rank_gt) + beta * L1(mem_pred, mem_gt)
    mse = jnp.mean((rank_pred - rank_gt) ** 2)
    l1 = jnp.mean(jnp.abs(x_row - g_row))
    out_ref[0, 0] = mse + beta * l1


def spearman_loss(mem_pred, mem_gt, beta: float = 0.0):
    """mem_pred, mem_gt: 1-D float arrays of length N. Returns scalar loss."""
    n = mem_pred.shape[0]
    # Pack the four logical inputs into two contiguous arrays (2 DMAs).
    rows = jnp.stack([mem_pred, mem_gt], axis=0).astype(jnp.float32)   # (2, N)
    cols = jnp.stack([mem_pred, mem_gt], axis=1).astype(jnp.float32)   # (N, 2)

    kernel = functools.partial(spearman_loss_kernel, n=n, beta=float(beta))
    out = pl.pallas_call(
        kernel,
        out_shape=jax.ShapeDtypeStruct((1, 1), jnp.float32),
        in_specs=[pl.BlockSpec(memory_space=pltpu.MemorySpace.VMEM),
                  pl.BlockSpec(memory_space=pltpu.MemorySpace.VMEM)],
        out_specs=pl.BlockSpec(memory_space=pltpu.MemorySpace.SMEM),
    )(rows, cols)
    return out[0, 0]


if __name__ == "__main__":
    key = jax.random.PRNGKey(0)
    kp, kg = jax.random.split(key)
    N = 128                       # number of scores (lane-aligned)
    BETA = 0.5                    # module "parameter"; set in-script

    mem_pred = jax.random.normal(kp, (N,), dtype=jnp.float32)
    mem_gt = jax.random.normal(kg, (N,), dtype=jnp.float32)

    loss = spearman_loss(mem_pred, mem_gt, beta=BETA)
    jax.block_until_ready(loss)
    print("KERNEL_OK")
</pallas_src>

<mosaic_0001>
module attributes {stable_mosaic.version = 11 : i64} {
  func.func @spearman_loss_kernel(%arg0: memref<2x128xf32, #tpu.memory_space<vmem>>, %arg1: memref<128x2xf32, #tpu.memory_space<vmem>>, %arg2: memref<1x1xf32, #tpu.memory_space<smem>>) attributes {dimension_semantics = [], scalar_prefetch = 0 : i64, scratch_operands = 0 : i64, tpu.core_type = #tpu.core_type<tc>} {
    %c0 = arith.constant 0 : index
    %c0_0 = arith.constant 0 : index
    %0 = vector.load %arg0[%c0, %c0_0] : memref<2x128xf32, #tpu.memory_space<vmem>>, vector<1x128xf32>
    %c1 = arith.constant 1 : index
    %c0_1 = arith.constant 0 : index
    %1 = vector.load %arg0[%c1, %c0_1] : memref<2x128xf32, #tpu.memory_space<vmem>>, vector<1x128xf32>
    %c0_2 = arith.constant 0 : index
    %c0_3 = arith.constant 0 : index
    %2 = vector.load %arg1[%c0_2, %c0_3] : memref<128x2xf32, #tpu.memory_space<vmem>>, vector<128x2xf32>
    %3 = vector.extract_strided_slice %2 {offsets = [0, 0], sizes = [128, 1], strides = [1, 1]} : vector<128x2xf32> to vector<128x1xf32>
    %4 = vector.extract_strided_slice %2 {offsets = [0, 1], sizes = [128, 1], strides = [1, 1]} : vector<128x2xf32> to vector<128x1xf32>
    %5 = tpu.iota {dimensions = array<i32: 1>} : vector<128x128xi32>
    %6 = tpu.iota {dimensions = array<i32: 0>} : vector<128x128xi32>
    %7 = arith.cmpi sgt, %5, %6 : vector<128x128xi32>
    %8 = vector.broadcast %0 : vector<1x128xf32> to vector<128x128xf32>
    %9 = vector.broadcast %3 : vector<128x1xf32> to vector<128x128xf32>
    %10 = arith.subf %8, %9 : vector<128x128xf32>
    %cst = arith.constant 0.000000e+00 : f32
    %11 = vector.broadcast %cst : f32 to vector<128x128xf32>
    %12 = arith.select %7, %10, %11 : vector<128x128xi1>, vector<128x128xf32>
    %13 = vector.shape_cast %12 : vector<128x128xf32> to vector<1x128x128xf32>
    %cst_4 = arith.constant dense<0.000000e+00> : vector<1xf32>
    %14 = vector.multi_reduction <add>, %13, %cst_4 [1, 2] : vector<1x128x128xf32> to vector<1xf32>
    %15 = vector.shape_cast %14 : vector<1xf32> to vector<1x1x1xf32>
    %16 = vector.extract %15[0, 0, 0] : f32 from vector<1x1x1xf32>
    %17 = arith.mulf %12, %12 : vector<128x128xf32>
    %18 = vector.shape_cast %17 : vector<128x128xf32> to vector<1x128x128xf32>
    %cst_5 = arith.constant dense<0.000000e+00> : vector<1xf32>
    %19 = vector.multi_reduction <add>, %18, %cst_5 [1, 2] : vector<1x128x128xf32> to vector<1xf32>
    %20 = vector.shape_cast %19 : vector<1xf32> to vector<1x1x1xf32>
    %21 = vector.extract %20[0, 0, 0] : f32 from vector<1x1x1xf32>
    %22 = arith.mulf %16, %16 : f32
    %cst_6 = arith.constant 1.638400e+04 : f32
    %23 = arith.divf %22, %cst_6 : f32
    %24 = arith.subf %21, %23 : f32
    %cst_7 = arith.constant 1.638300e+04 : f32
    %25 = arith.divf %24, %cst_7 : f32
    %cst_8 = arith.constant 0.000000e+00 : f32
    %26 = arith.maximumf %25, %cst_8 : f32
    %27 = math.sqrt %26 : f32
    %28 = arith.cmpf one, %27, %27 : f32
    %cst_9 = arith.constant 1.1920929E-7 : f32
    %29 = arith.select %28, %cst_9, %27 : f32
    %cst_10 = arith.constant 1.1920929E-7 : f32
    %30 = arith.addf %29, %cst_10 : f32
    %cst_11 = arith.constant 6.800000e+00 : f32
    %31 = arith.divf %cst_11, %30 : f32
    %cst_12 = arith.constant 5.000000e-01 : f32
    %32 = arith.mulf %cst_12, %31 : f32
    %33 = vector.broadcast %0 : vector<1x128xf32> to vector<128x128xf32>
    %34 = vector.broadcast %3 : vector<128x1xf32> to vector<128x128xf32>
    %35 = arith.subf %33, %34 : vector<128x128xf32>
    %36 = vector.broadcast %32 : f32 to vector<128x128xf32>
    %37 = arith.mulf %35, %36 : vector<128x128xf32>
    %38 = math.tanh %37 : vector<128x128xf32>
    %cst_13 = arith.constant 5.000000e-01 : f32
    %39 = vector.broadcast %cst_13 : f32 to vector<128x128xf32>
    %40 = arith.mulf %39, %38 : vector<128x128xf32>
    %cst_14 = arith.constant 5.000000e-01 : f32
    %41 = vector.broadcast %cst_14 : f32 to vector<128x128xf32>
    %42 = arith.addf %40, %41 : vector<128x128xf32>
    %cst_15 = arith.constant dense<0.000000e+00> : vector<128xf32>
    %43 = vector.multi_reduction <add>, %42, %cst_15 [1] : vector<128x128xf32> to vector<128xf32>
    %44 = vector.shape_cast %43 : vector<128xf32> to vector<128x1xf32>
    %cst_16 = arith.constant 5.000000e-01 : f32
    %45 = vector.broadcast %cst_16 : f32 to vector<128x1xf32>
    %46 = arith.addf %44, %45 : vector<128x1xf32>
    %cst_17 = arith.constant 1.280000e+02 : f32
    %47 = vector.broadcast %cst_17 : f32 to vector<128x1xf32>
    %48 = arith.divf %46, %47 : vector<128x1xf32>
    %49 = tpu.iota {dimensions = array<i32: 1>} : vector<128x128xi32>
    %50 = tpu.iota {dimensions = array<i32: 0>} : vector<128x128xi32>
    %51 = arith.cmpi slt, %49, %50 : vector<128x128xi32>
    %52 = vector.broadcast %1 : vector<1x128xf32> to vector<128x128xf32>
    %53 = vector.broadcast %4 : vector<128x1xf32> to vector<128x128xf32>
    %54 = arith.cmpf olt, %52, %53 : vector<128x128xf32>
    %55 = vector.broadcast %1 : vector<1x128xf32> to vector<128x128xf32>
    %56 = vector.broadcast %4 : vector<128x1xf32> to vector<128x128xf32>
    %57 = arith.cmpf oeq, %55, %56 : vector<128x128xf32>
    %58 = arith.andi %57, %51 : vector<128x128xi1>
    %59 = arith.ori %54, %58 : vector<128x128xi1>
    %cst_18 = arith.constant 1.000000e+00 : f32
    %cst_19 = arith.constant 0.000000e+00 : f32
    %60 = vector.broadcast %cst_18 : f32 to vector<128x128xf32>
    %61 = vector.broadcast %cst_19 : f32 to vector<128x128xf32>
    %62 = arith.select %59, %60, %61 : vector<128x128xi1>, vector<128x128xf32>
    %cst_20 = arith.constant dense<0.000000e+00> : vector<128xf32>
    %63 = vector.multi_reduction <add>, %62, %cst_20 [1] : vector<128x128xf32> to vector<128xf32>
    %64 = vector.shape_cast %63 : vector<128xf32> to vector<128x1xf32>
    %cst_21 = arith.constant 1.280000e+02 : f32
    %65 = vector.broadcast %cst_21 : f32 to vector<128x1xf32>
    %66 = arith.subf %65, %64 : vector<128x1xf32>
    %cst_22 = arith.constant 1.280000e+02 : f32
    %67 = vector.broadcast %cst_22 : f32 to vector<128x1xf32>
    %68 = arith.divf %66, %67 : vector<128x1xf32>
    %69 = arith.subf %48, %68 : vector<128x1xf32>
    %70 = arith.mulf %69, %69 : vector<128x1xf32>
    %71 = vector.shape_cast %70 : vector<128x1xf32> to vector<1x128x1xf32>
    %cst_23 = arith.constant dense<0.000000e+00> : vector<1xf32>
    %72 = vector.multi_reduction <add>, %71, %cst_23 [1, 2] : vector<1x128x1xf32> to vector<1xf32>
    %73 = vector.shape_cast %72 : vector<1xf32> to vector<1x1x1xf32>
    %74 = vector.extract %73[0, 0, 0] : f32 from vector<1x1x1xf32>
    %cst_24 = arith.constant 1.280000e+02 : f32
    %75 = arith.divf %74, %cst_24 : f32
    %76 = arith.subf %0, %1 : vector<1x128xf32>
    %77 = math.absf %76 : vector<1x128xf32>
    %78 = vector.shape_cast %77 : vector<1x128xf32> to vector<1x1x128xf32>
    %cst_25 = arith.constant dense<0.000000e+00> : vector<1xf32>
    %79 = vector.multi_reduction <add>, %78, %cst_25 [1, 2] : vector<1x1x128xf32> to vector<1xf32>
    %80 = vector.shape_cast %79 : vector<1xf32> to vector<1x1x1xf32>
    %81 = vector.extract %80[0, 0, 0] : f32 from vector<1x1x1xf32>
    %cst_26 = arith.constant 1.280000e+02 : f32
    %82 = arith.divf %81, %cst_26 : f32
    %cst_27 = arith.constant 5.000000e-01 : f32
    %83 = arith.mulf %cst_27, %82 : f32
    %84 = arith.addf %75, %83 : f32
    %c0_28 = arith.constant 0 : index
    %c0_29 = arith.constant 0 : index
    %85 = memref.load %arg2[%c0_28, %c0_29] : memref<1x1xf32, #tpu.memory_space<smem>>
    memref.store %84, %arg2[%c0_28, %c0_29] : memref<1x1xf32, #tpu.memory_space<smem>>
    return
  }
}

</mosaic_0001>

<llo_original>
// kernel: tpu_custom_call.1
$region0: #{tpu_custom_call.1}
  #allocation0 [shape = 'u32[]', space=smem, size = 0x4, offset = 0x4, fixed_abs, tag = 'smem constant byte address 0x4 - core index']
  #allocation1 [shape = 'u32[72,128]{1,0:T(1,128)}', space=vmem, size = 0x9000, scoped, tag = 'internal scratch']
  %s0 = inlined_call_operand.vmem [shape: f32[2,128], index: 0, kind: input, shape index: {}]
  %s1 = inlined_call_operand.vmem [shape: f32[128,2], index: 1, kind: input, shape index: {}]
  %s2 = inlined_call_operand.hbm [shape: f32[1,1], index: 2, kind: output, shape index: {}]
  %s3 = sld [smem:[#allocation0]]
  $region18: #{tpu_custom_call.1} parent=0
    _
  %s5 = ssub.s32 1, %s3
  %s6 = scalar_select 0, %s5, %s3
  $region1: #{tpu_custom_call.1} parent=0
    #allocation2 [shape = 'u8[512]{0}', space=smem, size = 0x200, scoped, tag = 'output window, operand 0, single buffered']
    #allocation3 [shape = 's32[1]{0}', space=sflag, size = 0x4, scoped, tag = 'scoped memory for tpu_custom_call.1']
    %7 = vsyncpa [#allocation3], 0
    // Predicated region
    $region2: #{tpu_custom_call.1} parent=1 // pred_check
      _
    $region3: #{tpu_custom_call.1} parent=1 // pred_check_branch
      %9 = sbr.rel (0) target = $region5
    $region4: #{tpu_custom_call.1} parent=1 // pred_region
      _
    $region5: #{tpu_custom_call.1} parent=1 // pred_fallthru
      _
    // Predicated region
    $region6: #{tpu_custom_call.1} parent=1 // pred_check
      _
    $region7: #{tpu_custom_call.1} parent=1 // pred_check_branch
      %11 = sbr.rel (0) target = $region9
    $region8: #{tpu_custom_call.1} parent=1 // pred_region
      _
    $region9: #{tpu_custom_call.1} parent=1 // pred_fallthru
      _
    %v12 = vld [vmem:[%s0] sm:$0x1]
    %v13 = vld [vmem:[%s0 + $0x1] sm:$0x1]
    %v14 = vld [vmem:[%s1] sm:$0xff]
    %v15 = vld [vmem:[%s1 + $0x8] sm:$0xff]
    %v16 = vld [vmem:[%s1 + $0x10] sm:$0xff]
    %v17 = vld [vmem:[%s1 + $0x18] sm:$0xff]
    %v18 = vld [vmem:[%s1 + $0x20] sm:$0xff]
    %v19 = vld [vmem:[%s1 + $0x28] sm:$0xff]
    %v20 = vld [vmem:[%s1 + $0x30] sm:$0xff]
    %v21 = vld [vmem:[%s1 + $0x38] sm:$0xff]
    %v22 = vld [vmem:[%s1 + $0x40] sm:$0xff]
    %v23 = vld [vmem:[%s1 + $0x48] sm:$0xff]
    %v24 = vld [vmem:[%s1 + $0x50] sm:$0xff]
    %v25 = vld [vmem:[%s1 + $0x58] sm:$0xff]
    %v26 = vld [vmem:[%s1 + $0x60] sm:$0xff]
    %v27 = vld [vmem:[%s1 + $0x68] sm:$0xff]
    %v28 = vld [vmem:[%s1 + $0x70] sm:$0xff]
    %v29 = vld [vmem:[%s1 + $0x78] sm:$0xff]
    %v30 = vlaneseq
    %v31 = vand.u32 %v30, 127
    %v32 = vlaneseq
    %v33 = vshrl.u32 %v32, 7
    %v34 = vadd.s32 %v33, 8
    %v35 = vadd.s32 %v33, 16
    %v36 = vadd.s32 %v33, 24
    %v37 = vadd.s32 %v33, 32
    %v38 = vadd.s32 %v33, 40
    %v39 = vadd.s32 %v33, 48
    %v40 = vadd.s32 %v33, 56
    %v41 = vadd.s32 %v33, 64
    %v42 = vadd.s32 %v33, 72
    %v43 = vadd.s32 %v33, 80
    %v44 = vadd.s32 %v33, 88
    %v45 = vadd.s32 %v33, 96
    %v46 = vadd.s32 %v33, 104
    %v47 = vadd.s32 %v33, 112
    %v48 = vadd.s32 %v33, 120
    %vm49 = vcmp.gt.s32.totalorder %v31, %v33
    %vm50 = vcmp.gt.s32.totalorder %v31, %v34
    %vm51 = vcmp.gt.s32.totalorder %v31, %v35
    %vm52 = vcmp.gt.s32.totalorder %v31, %v36
    %vm53 = vcmp.gt.s32.totalorder %v31, %v37
    %vm54 = vcmp.gt.s32.totalorder %v31, %v38
    %vm55 = vcmp.gt.s32.totalorder %v31, %v39
    %vm56 = vcmp.gt.s32.totalorder %v31, %v40
    %vm57 = vcmp.gt.s32.totalorder %v31, %v41
    %vm58 = vcmp.gt.s32.totalorder %v31, %v42
    %vm59 = vcmp.gt.s32.totalorder %v31, %v43
    %vm60 = vcmp.gt.s32.totalorder %v31, %v44
    %vm61 = vcmp.gt.s32.totalorder %v31, %v45
    %vm62 = vcmp.gt.s32.totalorder %v31, %v46
    %vm63 = vcmp.gt.s32.totalorder %v31, %v47
    %vm64 = vcmp.gt.s32.totalorder %v31, %v48
    %v65 = vperm.slane %v12, 0
    %67 = vset.pattern.permute.xlu0 0
    %68 = vperm.xlu0 %67, %v14
    %v69 = vpop.permute.xlu0 %68
    %72 = vset.pattern.permute.xlu0 0
    %73 = vperm.xlu0 %72, %v15
    %v74 = vpop.permute.xlu0 %73
    %77 = vset.pattern.permute.xlu0 0
    %78 = vperm.xlu0 %77, %v16
    %v79 = vpop.permute.xlu0 %78
    %82 = vset.pattern.permute.xlu0 0
    %83 = vperm.xlu0 %82, %v17
    %v84 = vpop.permute.xlu0 %83
    %87 = vset.pattern.permute.xlu0 0
    %88 = vperm.xlu0 %87, %v18
    %v89 = vpop.permute.xlu0 %88
    %92 = vset.pattern.permute.xlu0 0
    %93 = vperm.xlu0 %92, %v19
    %v94 = vpop.permute.xlu0 %93
    %97 = vset.pattern.permute.xlu0 0
    %98 = vperm.xlu0 %97, %v20
    %v99 = vpop.permute.xlu0 %98
    %102 = vset.pattern.permute.xlu0 0
    %103 = vperm.xlu0 %102, %v21
    %v104 = vpop.permute.xlu0 %103
    %107 = vset.pattern.permute.xlu0 0
    %108 = vperm.xlu0 %107, %v22
    %v109 = vpop.permute.xlu0 %108
    %112 = vset.pattern.permute.xlu0 0
    %113 = vperm.xlu0 %112, %v23
    %v114 = vpop.permute.xlu0 %113
    %117 = vset.pattern.permute.xlu0 0
    %118 = vperm.xlu0 %117, %v24
    %v119 = vpop.permute.xlu0 %118
    %122 = vset.pattern.permute.xlu0 0
    %123 = vperm.xlu0 %122, %v25
    %v124 = vpop.permute.xlu0 %123
    %127 = vset.pattern.permute.xlu0 0
    %128 = vperm.xlu0 %127, %v26
    %v129 = vpop.permute.xlu0 %128
    %132 = vset.pattern.permute.xlu0 0
    %133 = vperm.xlu0 %132, %v27
    %v134 = vpop.permute.xlu0 %133
    %137 = vset.pattern.permute.xlu0 0
    %138 = vperm.xlu0 %137, %v28
    %v139 = vpop.permute.xlu0 %138
    %142 = vset.pattern.permute.xlu0 0
    %143 = vperm.xlu0 %142, %v29
    %v144 = vpop.permute.xlu0 %143
    %v146 = vsub.f32 %v65, %v69
    %v147 = vsub.f32 %v65, %v74
    %v148 = vsub.f32 %v65, %v79
    %v149 = vsub.f32 %v65, %v84
    %v150 = vsub.f32 %v65, %v89
    %v151 = vsub.f32 %v65, %v94
    %v152 = vsub.f32 %v65, %v99
    %v153 = vsub.f32 %v65, %v104
    %v154 = vsub.f32 %v65, %v109
    %v155 = vsub.f32 %v65, %v114
    %v156 = vsub.f32 %v65, %v119
    %v157 = vsub.f32 %v65, %v124
    %v158 = vsub.f32 %v65, %v129
    %v159 = vsub.f32 %v65, %v134
    %v160 = vsub.f32 %v65, %v139
    %v161 = vsub.f32 %v65, %v144
    %v162 = vsel %vm49, %v146, 0.0
    %v163 = vsel %vm50, %v147, 0.0
    %v164 = vsel %vm51, %v148, 0.0
    %v165 = vsel %vm52, %v149, 0.0
    %v166 = vsel %vm53, %v150, 0.0
    %v167 = vsel %vm54, %v151, 0.0
    %v168 = vsel %vm55, %v152, 0.0
    %v169 = vsel %vm56, %v153, 0.0
    %v170 = vsel %vm57, %v154, 0.0
    %v171 = vsel %vm58, %v155, 0.0
    %v172 = vsel %vm59, %v156, 0.0
    %v173 = vsel %vm60, %v157, 0.0
    %v174 = vsel %vm61, %v158, 0.0
    %v175 = vsel %vm62, %v159, 0.0
    %v176 = vsel %vm63, %v160, 0.0
    %v177 = vsel %vm64, %v161, 0.0
    %v178 = vadd.f32 %v162, %v163
    %v179 = vadd.f32 %v178, %v164
    %v180 = vadd.f32 %v179, %v165
    %v181 = vadd.f32 %v180, %v166
    %v182 = vadd.f32 %v181, %v167
    %v183 = vadd.f32 %v182, %v168
    %v184 = vadd.f32 %v183, %v169
    %v185 = vadd.f32 %v184, %v170
    %v186 = vadd.f32 %v185, %v171
    %v187 = vadd.f32 %v186, %v172
    %v188 = vadd.f32 %v187, %v173
    %v189 = vadd.f32 %v188, %v174
    %v190 = vadd.f32 %v189, %v175
    %v191 = vadd.f32 %v190, %v176
    %v192 = vadd.f32 %v191, %v177
    %193 = vadd.xlane.f32.xlu0 %v192
    %v194 = vpop.xlane.xlu0 %193
    %v195 = vrot.slane %v194, 4
    %v196 = vadd.f32 %v194, %v195
    %v197 = vrot.slane %v196, 2
    %v198 = vadd.f32 %v196, %v197
    %v199 = vrot.slane %v198, 1
    %v200 = vadd.f32 %v198, %v199
    %s201 = vtos %v200
    %v202 = vmul.f32 %v162, %v162
    %v203 = vmul.f32 %v163, %v163
    %v204 = vmul.f32 %v164, %v164
    %v205 = vmul.f32 %v165, %v165
    %v206 = vmul.f32 %v166, %v166
    %v207 = vmul.f32 %v167, %v167
    %v208 = vmul.f32 %v168, %v168
    %v209 = vmul.f32 %v169, %v169
    %v210 = vmul.f32 %v170, %v170
    %v211 = vmul.f32 %v171, %v171
    %v212 = vmul.f32 %v172, %v172
    %v213 = vmul.f32 %v173, %v173
    %v214 = vmul.f32 %v174, %v174
    %v215 = vmul.f32 %v175, %v175
    %v216 = vmul.f32 %v176, %v176
    %v217 = vmul.f32 %v177, %v177
    %v218 = vadd.f32 %v202, %v203
    %v219 = vadd.f32 %v218, %v204
    %v220 = vadd.f32 %v219, %v205
    %v221 = vadd.f32 %v220, %v206
    %v222 = vadd.f32 %v221, %v207
    %v223 = vadd.f32 %v222, %v208
    %v224 = vadd.f32 %v223, %v209
    %v225 = vadd.f32 %v224, %v210
    %v226 = vadd.f32 %v225, %v211
    %v227 = vadd.f32 %v226, %v212
    %v228 = vadd.f32 %v227, %v213
    %v229 = vadd.f32 %v228, %v214
    %v230 = vadd.f32 %v229, %v215
    %v231 = vadd.f32 %v230, %v216
    %v232 = vadd.f32 %v231, %v217
    %233 = vadd.xlane.f32.xlu0 %v232
    %v234 = vpop.xlane.xlu0 %233
    %v235 = vrot.slane %v234, 4
    %v236 = vadd.f32 %v234, %v235
    %v237 = vrot.slane %v236, 2
    %v238 = vadd.f32 %v236, %v237
    %v239 = vrot.slane %v238, 1
    %v240 = vadd.f32 %v238, %v239
    %s241 = vtos %v240
    %s242 = smul.f32 %s201, %s201
    %v243 = vrcp.pop 16384.0
    %v244 = vmul.f32 16384.0, %v243
    %v245 = vsub.f32 1.0, %v244
    %v246 = vmul.f32 %v243, %v245
    %v247 = vadd.f32 %v243, %v246
    %vm248 = vweird.f32 %v243
    %v249 = vsel %vm248, %v243, %v247
    %s250 = vtos %v249
    %s251 = smul.f32 %s242, %s250
    %s252 = ssub.f32 %s241, %s251
    %v253 = vrcp.pop 16383.0
    %v254 = vmul.f32 16383.0, %v253
    %v255 = vsub.f32 1.0, %v254
    %v256 = vmul.f32 %v253, %v255
    %v257 = vadd.f32 %v253, %v256
    %vm258 = vweird.f32 %v253
    %v259 = vsel %vm258, %v253, %v257
    %s260 = vtos %v259
    %s261 = smul.f32 %s252, %s260
    %s262 = smax.f32 %s261, 0.0
    %v263 = vstv %s262
    %v264 = vrsqrt.pop %v263
    %v265 = vmul.f32 %v264, %v263
    %v266 = vmul.f32 %v265, %v264
    %v267 = vmul.f32 0.5, %v266
    %v268 = vsub.f32 1.5, %v267
    %v269 = vmul.f32 %v264, %v268
    %v270 = vmul.f32 %v263, %v269
    %vm271 = vcmp.eq.f32.partialorder %v263, inf
    %v272 = vsel %vm271, %v263, %v270
    %vm273 = vcmp.eq.f32.partialorder %v263, 0.0
    %v274 = vand.u32 %v263, 2147483648
    %v275 = vsel %vm273, %v274, %v272
    %s276 = vtos %v275
    %p277 = scmp.ne.f32.partialorder %s276, %s276
    %s278 = scalar_select %p277, 1.1920929e-07, %s276
    %s279 = sadd.f32 %s278, 1.1920929e-07
    %v280 = vstv %s279
    %v281 = vrcp.pop %v280
    %v282 = vmul.f32 %v280, %v281
    %v283 = vsub.f32 1.0, %v282
    %v284 = vmul.f32 %v281, %v283
    %v285 = vadd.f32 %v281, %v284
    %vm286 = vweird.f32 %v280
    %vm287 = vweird.f32 %v281
    %vm288 = vmor %vm286, %vm287
    %v289 = vsel %vm288, %v281, %v285
    %v290 = vand.u32 2147483647, %v280
    %vm291 = vcmp.eq.f32.partialorder %v290, 8.507059e+37
    %v292 = vand.u32 %v280, 2147483648
    %v293 = vor.u32 1.1754944e-38, %v292
    %v294 = vsel %vm291, %v293, %v289
    %s295 = vtos %v294
    %s296 = smul.f32 6.8, %s295
    %s297 = smul.f32 %s296, 0.5
    %v298 = vstv %s297
    %v299 = vmul.f32 %v146, %v298
    %v300 = vmul.f32 %v147, %v298
    %v301 = vmul.f32 %v148, %v298
    %v302 = vmul.f32 %v149, %v298
    %v303 = vmul.f32 %v150, %v298
    %v304 = vmul.f32 %v151, %v298
    %v305 = vmul.f32 %v152, %v298
    %v306 = vmul.f32 %v153, %v298
    %v307 = vmul.f32 %v154, %v298
    %v308 = vmul.f32 %v155, %v298
    %v309 = vmul.f32 %v156, %v298
    %v310 = vmul.f32 %v157, %v298
    %v311 = vmul.f32 %v158, %v298
    %v312 = vmul.f32 %v159, %v298
    %v313 = vmul.f32 %v160, %v298
    %v314 = vmul.f32 %v161, %v298
    %v315 = vtanh.pop %v299
    %v316 = vtanh.pop %v300
    %v317 = vtanh.pop %v301
    %v318 = vtanh.pop %v302
    %v319 = vtanh.pop %v303
    %v320 = vtanh.pop %v304
    %v321 = vtanh.pop %v305
    %v322 = vtanh.pop %v306
    %v323 = vtanh.pop %v307
    %v324 = vtanh.pop %v308
    %v325 = vtanh.pop %v309
    %v326 = vtanh.pop %v310
    %v327 = vtanh.pop %v311
    %v328 = vtanh.pop %v312
    %v329 = vtanh.pop %v313
    %v330 = vtanh.pop %v314
    %v331 = vmul.f32 %v315, 0.5
    %v332 = vmul.f32 %v316, 0.5
    %v333 = vmul.f32 %v317, 0.5
    %v334 = vmul.f32 %v318, 0.5
    %v335 = vmul.f32 %v319, 0.5
    %v336 = vmul.f32 %v320, 0.5
    %v337 = vmul.f32 %v321, 0.5
    %v338 = vmul.f32 %v322, 0.5
    %v339 = vmul.f32 %v323, 0.5
    %v340 = vmul.f32 %v324, 0.5
    %v341 = vmul.f32 %v325, 0.5
    %v342 = vmul.f32 %v326, 0.5
    %v343 = vmul.f32 %v327, 0.5
    %v344 = vmul.f32 %v328, 0.5
    %v345 = vmul.f32 %v329, 0.5
    %v346 = vmul.f32 %v330, 0.5
    %v347 = vadd.f32 %v331, 0.5
    %v348 = vadd.f32 %v332, 0.5
    %v349 = vadd.f32 %v333, 0.5
    %v350 = vadd.f32 %v334, 0.5
    %v351 = vadd.f32 %v335, 0.5
    %v352 = vadd.f32 %v336, 0.5
    %v353 = vadd.f32 %v337, 0.5
    %v354 = vadd.f32 %v338, 0.5
    %v355 = vadd.f32 %v339, 0.5
    %v356 = vadd.f32 %v340, 0.5
    %v357 = vadd.f32 %v341, 0.5
    %v358 = vadd.f32 %v342, 0.5
    %v359 = vadd.f32 %v343, 0.5
    %v360 = vadd.f32 %v344, 0.5
    %v361 = vadd.f32 %v345, 0.5
    %v362 = vadd.f32 %v346, 0.5
    %363 = vadd.xlane.f32.xlu0 %v347
    %v364 = vpop.xlane.xlu0 %363
    %365 = vadd.xlane.f32.xlu0 %v348
    %v366 = vpop.xlane.xlu0 %365
    %367 = vadd.xlane.f32.xlu0 %v349
    %v368 = vpop.xlane.xlu0 %367
    %369 = vadd.xlane.f32.xlu0 %v350
    %v370 = vpop.xlane.xlu0 %369
    %371 = vadd.xlane.f32.xlu0 %v351
    %v372 = vpop.xlane.xlu0 %371
    %373 = vadd.xlane.f32.xlu0 %v352
    %v374 = vpop.xlane.xlu0 %373
    %375 = vadd.xlane.f32.xlu0 %v353
    %v376 = vpop.xlane.xlu0 %375
    %377 = vadd.xlane.f32.xlu0 %v354
    %v378 = vpop.xlane.xlu0 %377
    %379 = vadd.xlane.f32.xlu0 %v355
    %v380 = vpop.xlane.xlu0 %379
    %381 = vadd.xlane.f32.xlu0 %v356
    %v382 = vpop.xlane.xlu0 %381
    %383 = vadd.xlane.f32.xlu0 %v357
    %v384 = vpop.xlane.xlu0 %383
    %385 = vadd.xlane.f32.xlu0 %v358
    %v386 = vpop.xlane.xlu0 %385
    %387 = vadd.xlane.f32.xlu0 %v359
    %v388 = vpop.xlane.xlu0 %387
    %389 = vadd.xlane.f32.xlu0 %v360
    %v390 = vpop.xlane.xlu0 %389
    %391 = vadd.xlane.f32.xlu0 %v361
    %v392 = vpop.xlane.xlu0 %391
    %393 = vadd.xlane.f32.xlu0 %v362
    %v394 = vpop.xlane.xlu0 %393
    %v395 = vadd.f32 %v364, 0.5
    %v396 = vadd.f32 %v366, 0.5
    %v397 = vadd.f32 %v368, 0.5
    %v398 = vadd.f32 %v370, 0.5
    %v399 = vadd.f32 %v372, 0.5
    %v400 = vadd.f32 %v374, 0.5
    %v401 = vadd.f32 %v376, 0.5
    %v402 = vadd.f32 %v378, 0.5
    %v403 = vadd.f32 %v380, 0.5
    %v404 = vadd.f32 %v382, 0.5
    %v405 = vadd.f32 %v384, 0.5
    %v406 = vadd.f32 %v386, 0.5
    %v407 = vadd.f32 %v388, 0.5
    %v408 = vadd.f32 %v390, 0.5
    %v409 = vadd.f32 %v392, 0.5
    %v410 = vadd.f32 %v394, 0.5
    %v411 = vrcp.pop 128.0
    %v412 = vmul.f32 128.0, %v411
    %v413 = vsub.f32 1.0, %v412
    %v414 = vmul.f32 %v411, %v413
    %v415 = vadd.f32 %v411, %v414
    %vm416 = vweird.f32 %v411
    %v417 = vsel %vm416, %v411, %v415
    %v418 = vmul.f32 %v395, %v417
    %v419 = vmul.f32 %v396, %v417
    %v420 = vmul.f32 %v397, %v417
    %v421 = vmul.f32 %v398, %v417
    %v422 = vmul.f32 %v399, %v417
    %v423 = vmul.f32 %v400, %v417
    %v424 = vmul.f32 %v401, %v417
    %v425 = vmul.f32 %v402, %v417
    %v426 = vmul.f32 %v403, %v417
    %v427 = vmul.f32 %v404, %v417
    %v428 = vmul.f32 %v405, %v417
    %v429 = vmul.f32 %v406, %v417
    %v430 = vmul.f32 %v407, %v417
    %v431 = vmul.f32 %v408, %v417
    %v432 = vmul.f32 %v409, %v417
    %v433 = vmul.f32 %v410, %v417
    %vm434 = vcmp.lt.s32.totalorder %v31, %v33
    %vm435 = vcmp.lt.s32.totalorder %v31, %v34
    %vm436 = vcmp.lt.s32.totalorder %v31, %v35
    %vm437 = vcmp.lt.s32.totalorder %v31, %v36
    %vm438 = vcmp.lt.s32.totalorder %v31, %v37
    %vm439 = vcmp.lt.s32.totalorder %v31, %v38
    %vm440 = vcmp.lt.s32.totalorder %v31, %v39
    %vm441 = vcmp.lt.s32.totalorder %v31, %v40
    %vm442 = vcmp.lt.s32.totalorder %v31, %v41
    %vm443 = vcmp.lt.s32.totalorder %v31, %v42
    %vm444 = vcmp.lt.s32.totalorder %v31, %v43
    %vm445 = vcmp.lt.s32.totalorder %v31, %v44
    %vm446 = vcmp.lt.s32.totalorder %v31, %v45
    %vm447 = vcmp.lt.s32.totalorder %v31, %v46
    %vm448 = vcmp.lt.s32.totalorder %v31, %v47
    %vm449 = vcmp.lt.s32.totalorder %v31, %v48
    %v450 = vperm.slane %v13, 0
    %451 = vset.pattern.permute.xlu0 1
    %452 = vperm.xlu0 %451, %v14
    %v453 = vpop.permute.xlu0 %452
    %455 = vset.pattern.permute.xlu0 1
    %456 = vperm.xlu0 %455, %v15
    %v457 = vpop.permute.xlu0 %456
    %459 = vset.pattern.permute.xlu0 1
    %460 = vperm.xlu0 %459, %v16
    %v461 = vpop.permute.xlu0 %460
    %463 = vset.pattern.permute.xlu0 1
    %464 = vperm.xlu0 %463, %v17
    %v465 = vpop.permute.xlu0 %464
    %467 = vset.pattern.permute.xlu0 1
    %468 = vperm.xlu0 %467, %v18
    %v469 = vpop.permute.xlu0 %468
    %471 = vset.pattern.permute.xlu0 1
    %472 = vperm.xlu0 %471, %v19
    %v473 = vpop.permute.xlu0 %472
    %475 = vset.pattern.permute.xlu0 1
    %476 = vperm.xlu0 %475, %v20
    %v477 = vpop.permute.xlu0 %476
    %479 = vset.pattern.permute.xlu0 1
    %480 = vperm.xlu0 %479, %v21
    %v481 = vpop.permute.xlu0 %480
    %483 = vset.pattern.permute.xlu0 1
    %484 = vperm.xlu0 %483, %v22
    %v485 = vpop.permute.xlu0 %484
    %487 = vset.pattern.permute.xlu0 1
    %488 = vperm.xlu0 %487, %v23
    %v489 = vpop.permute.xlu0 %488
    %491 = vset.pattern.permute.xlu0 1
    %492 = vperm.xlu0 %491, %v24
    %v493 = vpop.permute.xlu0 %492
    %495 = vset.pattern.permute.xlu0 1
    %496 = vperm.xlu0 %495, %v25
    %v497 = vpop.permute.xlu0 %496
    %499 = vset.pattern.permute.xlu0 1
    %500 = vperm.xlu0 %499, %v26
    %v501 = vpop.permute.xlu0 %500
    %503 = vset.pattern.permute.xlu0 1
    %504 = vperm.xlu0 %503, %v27
    %v505 = vpop.permute.xlu0 %504
    %507 = vset.pattern.permute.xlu0 1
    %508 = vperm.xlu0 %507, %v28
    %v509 = vpop.permute.xlu0 %508
    %511 = vset.pattern.permute.xlu0 1
    %512 = vperm.xlu0 %511, %v29
    %v513 = vpop.permute.xlu0 %512
    %vm515 = vcmp.lt.f32.partialorder %v450, %v453
    %vm516 = vcmp.lt.f32.partialorder %v450, %v457
    %vm517 = vcmp.lt.f32.partialorder %v450, %v461
    %vm518 = vcmp.lt.f32.partialorder %v450, %v465
    %vm519 = vcmp.lt.f32.partialorder %v450, %v469
    %vm520 = vcmp.lt.f32.partialorder %v450, %v473
    %vm521 = vcmp.lt.f32.partialorder %v450, %v477
    %vm522 = vcmp.lt.f32.partialorder %v450, %v481
    %vm523 = vcmp.lt.f32.partialorder %v450, %v485
    %vm524 = vcmp.lt.f32.partialorder %v450, %v489
    %vm525 = vcmp.lt.f32.partialorder %v450, %v493
    %vm526 = vcmp.lt.f32.partialorder %v450, %v497
    %vm527 = vcmp.lt.f32.partialorder %v450, %v501
    %vm528 = vcmp.lt.f32.partialorder %v450, %v505
    %vm529 = vcmp.lt.f32.partialorder %v450, %v509
    %vm530 = vcmp.lt.f32.partialorder %v450, %v513
    %vm531 = vcmp.eq.f32.partialorder %v450, %v453
    %vm532 = vcmp.eq.f32.partialorder %v450, %v457
    %vm533 = vcmp.eq.f32.partialorder %v450, %v461
    %vm534 = vcmp.eq.f32.partialorder %v450, %v465
    %vm535 = vcmp.eq.f32.partialorder %v450, %v469
    %vm536 = vcmp.eq.f32.partialorder %v450, %v473
    %vm537 = vcmp.eq.f32.partialorder %v450, %v477
    %vm538 = vcmp.eq.f32.partialorder %v450, %v481
    %vm539 = vcmp.eq.f32.partialorder %v450, %v485
    %vm540 = vcmp.eq.f32.partialorder %v450, %v489
    %vm541 = vcmp.eq.f32.partialorder %v450, %v493
    %vm542 = vcmp.eq.f32.partialorder %v450, %v497
    %vm543 = vcmp.eq.f32.partialorder %v450, %v501
    %vm544 = vcmp.eq.f32.partialorder %v450, %v505
    %vm545 = vcmp.eq.f32.partialorder %v450, %v509
    %vm546 = vcmp.eq.f32.partialorder %v450, %v513
    %vm547 = vmand %vm531, %vm434
    %vm548 = vmand %vm532, %vm435
    %vm549 = vmand %vm533, %vm436
    %vm550 = vmand %vm534, %vm437
    %vm551 = vmand %vm535, %vm438
    %vm552 = vmand %vm536, %vm439
    %vm553 = vmand %vm537, %vm440
    %vm554 = vmand %vm538, %vm441
    %vm555 = vmand %vm539, %vm442
    %vm556 = vmand %vm540, %vm443
    %vm557 = vmand %vm541, %vm444
    %vm558 = vmand %vm542, %vm445
    %vm559 = vmand %vm543, %vm446
    %vm560 = vmand %vm544, %vm447
    %vm561 = vmand %vm545, %vm448
    %vm562 = vmand %vm546, %vm449
    %vm563 = vmor %vm515, %vm547
    %vm564 = vmor %vm516, %vm548
    %vm565 = vmor %vm517, %vm549
    %vm566 = vmor %vm518, %vm550
    %vm567 = vmor %vm519, %vm551
    %vm568 = vmor %vm520, %vm552
    %vm569 = vmor %vm521, %vm553
    %vm570 = vmor %vm522, %vm554
    %vm571 = vmor %vm523, %vm555
    %vm572 = vmor %vm524, %vm556
    %vm573 = vmor %vm525, %vm557
    %vm574 = vmor %vm526, %vm558
    %vm575 = vmor %vm527, %vm559
    %vm576 = vmor %vm528, %vm560
    %vm577 = vmor %vm529, %vm561
    %vm578 = vmor %vm530, %vm562
    %v579 = vsel %vm563, 1.0, 0.0
    %v580 = vsel %vm564, 1.0, 0.0
    %v581 = vsel %vm565, 1.0, 0.0
    %v582 = vsel %vm566, 1.0, 0.0
    %v583 = vsel %vm567, 1.0, 0.0
    %v584 = vsel %vm568, 1.0, 0.0
    %v585 = vsel %vm569, 1.0, 0.0
    %v586 = vsel %vm570, 1.0, 0.0
    %v587 = vsel %vm571, 1.0, 0.0
    %v588 = vsel %vm572, 1.0, 0.0
    %v589 = vsel %vm573, 1.0, 0.0
    %v590 = vsel %vm574, 1.0, 0.0
    %v591 = vsel %vm575, 1.0, 0.0
    %v592 = vsel %vm576, 1.0, 0.0
    %v593 = vsel %vm577, 1.0, 0.0
    %v594 = vsel %vm578, 1.0, 0.0
    %595 = vadd.xlane.f32.xlu0 %v579
    %v596 = vpop.xlane.xlu0 %595
    %597 = vadd.xlane.f32.xlu0 %v580
    %v598 = vpop.xlane.xlu0 %597
    %599 = vadd.xlane.f32.xlu0 %v581
    %v600 = vpop.xlane.xlu0 %599
    %601 = vadd.xlane.f32.xlu0 %v582
    %v602 = vpop.xlane.xlu0 %601
    %603 = vadd.xlane.f32.xlu0 %v583
    %v604 = vpop.xlane.xlu0 %603
    %605 = vadd.xlane.f32.xlu0 %v584
    %v606 = vpop.xlane.xlu0 %605
    %607 = vadd.xlane.f32.xlu0 %v585
    %v608 = vpop.xlane.xlu0 %607
    %609 = vadd.xlane.f32.xlu0 %v586
    %v610 = vpop.xlane.xlu0 %609
    %611 = vadd.xlane.f32.xlu0 %v587
    %v612 = vpop.xlane.xlu0 %611
    %613 = vadd.xlane.f32.xlu0 %v588
    %v614 = vpop.xlane.xlu0 %613
    %615 = vadd.xlane.f32.xlu0 %v589
    %v616 = vpop.xlane.xlu0 %615
    %617 = vadd.xlane.f32.xlu0 %v590
    %v618 = vpop.xlane.xlu0 %617
    %619 = vadd.xlane.f32.xlu0 %v591
    %v620 = vpop.xlane.xlu0 %619
    %621 = vadd.xlane.f32.xlu0 %v592
    %v622 = vpop.xlane.xlu0 %621
    %623 = vadd.xlane.f32.xlu0 %v593
    %v624 = vpop.xlane.xlu0 %623
    %625 = vadd.xlane.f32.xlu0 %v594
    %v626 = vpop.xlane.xlu0 %625
    %v627 = vsub.f32 128.0, %v596
    %v628 = vsub.f32 128.0, %v598
    %v629 = vsub.f32 128.0, %v600
    %v630 = vsub.f32 128.0, %v602
    %v631 = vsub.f32 128.0, %v604
    %v632 = vsub.f32 128.0, %v606
    %v633 = vsub.f32 128.0, %v608
    %v634 = vsub.f32 128.0, %v610
    %v635 = vsub.f32 128.0, %v612
    %v636 = vsub.f32 128.0, %v614
    %v637 = vsub.f32 128.0, %v616
    %v638 = vsub.f32 128.0, %v618
    %v639 = vsub.f32 128.0, %v620
    %v640 = vsub.f32 128.0, %v622
    %v641 = vsub.f32 128.0, %v624
    %v642 = vsub.f32 128.0, %v626
    %v643 = vmul.f32 %v627, %v417
    %v644 = vmul.f32 %v628, %v417
    %v645 = vmul.f32 %v629, %v417
    %v646 = vmul.f32 %v630, %v417
    %v647 = vmul.f32 %v631, %v417
    %v648 = vmul.f32 %v632, %v417
    %v649 = vmul.f32 %v633, %v417
    %v650 = vmul.f32 %v634, %v417
    %v651 = vmul.f32 %v635, %v417
    %v652 = vmul.f32 %v636, %v417
    %v653 = vmul.f32 %v637, %v417
    %v654 = vmul.f32 %v638, %v417
    %v655 = vmul.f32 %v639, %v417
    %v656 = vmul.f32 %v640, %v417
    %v657 = vmul.f32 %v641, %v417
    %v658 = vmul.f32 %v642, %v417
    %v659 = vsub.f32 %v418, %v643
    %v660 = vsub.f32 %v419, %v644
    %v661 = vsub.f32 %v420, %v645
    %v662 = vsub.f32 %v421, %v646
    %v663 = vsub.f32 %v422, %v647
    %v664 = vsub.f32 %v423, %v648
    %v665 = vsub.f32 %v424, %v649
    %v666 = vsub.f32 %v425, %v650
    %v667 = vsub.f32 %v426, %v651
    %v668 = vsub.f32 %v427, %v652
    %v669 = vsub.f32 %v428, %v653
    %v670 = vsub.f32 %v429, %v654
    %v671 = vsub.f32 %v430, %v655
    %v672 = vsub.f32 %v431, %v656
    %v673 = vsub.f32 %v432, %v657
    %v674 = vsub.f32 %v433, %v658
    %v675 = vmul.f32 %v659, %v659
    %v676 = vmul.f32 %v660, %v660
    %v677 = vmul.f32 %v661, %v661
    %v678 = vmul.f32 %v662, %v662
    %v679 = vmul.f32 %v663, %v663
    %v680 = vmul.f32 %v664, %v664
    %v681 = vmul.f32 %v665, %v665
    %v682 = vmul.f32 %v666, %v666
    %v683 = vmul.f32 %v667, %v667
    %v684 = vmul.f32 %v668, %v668
    %v685 = vmul.f32 %v669, %v669
    %v686 = vmul.f32 %v670, %v670
    %v687 = vmul.f32 %v671, %v671
    %v688 = vmul.f32 %v672, %v672
    %v689 = vmul.f32 %v673, %v673
    %v690 = vmul.f32 %v674, %v674
    %vm691 = vcmask 7168
    %v692 = vsel %vm691, %v675, 0.0
    %v693 = vsel %vm691, %v676, 0.0
    %v694 = vadd.f32 %v692, %v693
    %v695 = vsel %vm691, %v677, 0.0
    %v696 = vadd.f32 %v694, %v695
    %v697 = vsel %vm691, %v678, 0.0
    %v698 = vadd.f32 %v696, %v697
    %v699 = vsel %vm691, %v679, 0.0
    %v700 = vadd.f32 %v698, %v699
    %v701 = vsel %vm691, %v680, 0.0
    %v702 = vadd.f32 %v700, %v701
    %v703 = vsel %vm691, %v681, 0.0
    %v704 = vadd.f32 %v702, %v703
    %v705 = vsel %vm691, %v682, 0.0
    %v706 = vadd.f32 %v704, %v705
    %v707 = vsel %vm691, %v683, 0.0
    %v708 = vadd.f32 %v706, %v707
    %v709 = vsel %vm691, %v684, 0.0
    %v710 = vadd.f32 %v708, %v709
    %v711 = vsel %vm691, %v685, 0.0
    %v712 = vadd.f32 %v710, %v711
    %v713 = vsel %vm691, %v686, 0.0
    %v714 = vadd.f32 %v712, %v713
    %v715 = vsel %vm691, %v687, 0.0
    %v716 = vadd.f32 %v714, %v715
    %v717 = vsel %vm691, %v688, 0.0
    %v718 = vadd.f32 %v716, %v717
    %v719 = vsel %vm691, %v689, 0.0
    %v720 = vadd.f32 %v718, %v719
    %v721 = vsel %vm691, %v690, 0.0
    %v722 = vadd.f32 %v720, %v721
    %723 = vadd.xlane.f32.xlu0 %v722
    %v724 = vpop.xlane.xlu0 %723
    %v725 = vrot.slane %v724, 4
    %v726 = vadd.f32 %v724, %v725
    %v727 = vrot.slane %v726, 2
    %v728 = vadd.f32 %v726, %v727
    %v729 = vrot.slane %v728, 1
    %v730 = vadd.f32 %v728, %v729
    %s731 = vtos %v730
    %v732 = vrcp.pop 128.0
    %v733 = vmul.f32 128.0, %v732
    %v734 = vsub.f32 1.0, %v733
    %v735 = vmul.f32 %v732, %v734
    %v736 = vadd.f32 %v732, %v735
    %vm737 = vweird.f32 %v732
    %v738 = vsel %vm737, %v732, %v736
    %s739 = vtos %v738
    %s740 = smul.f32 %s731, %s739
    %v741 = vsub.f32 %v12, %v13
    %v742 = vand.u32 2147483647, %v741
    %vm743 = vcmask 1040384
    %v744 = vsel %vm743, %v742, 0.0
    %745 = vadd.xlane.f32.xlu0 %v744
    %v746 = vpop.xlane.xlu0 %745
    %v747 = vrot.slane %v746, 4
    %v748 = vadd.f32 %v746, %v747
    %v749 = vrot.slane %v748, 2
    %v750 = vadd.f32 %v748, %v749
    %v751 = vrot.slane %v750, 1
    %v752 = vadd.f32 %v750, %v751
    %s753 = vtos %v752
    %v754 = vrcp.pop 128.0
    %v755 = vmul.f32 128.0, %v754
    %v756 = vsub.f32 1.0, %v755
    %v757 = vmul.f32 %v754, %v756
    %v758 = vadd.f32 %v754, %v757
    %vm759 = vweird.f32 %v754
    %v760 = vsel %vm759, %v754, %v758
    %s761 = vtos %v760
    %s762 = smul.f32 %s753, %s761
    %s763 = smul.f32 %s762, 0.5
    %s764 = sadd.f32 %s740, %s763
    %s765 = scalar_lea.smem [#allocation2], 0
    %766 = sst [smem:[%s765]] %s764
    // Predicated region
    $region10: #{tpu_custom_call.1} parent=1 // pred_check
      _
    $region11: #{tpu_custom_call.1} parent=1 // pred_check_branch
      %768 = sbr.rel (0) target = $region13
    $region12: #{tpu_custom_call.1} parent=1 // pred_region
      %770 = vsyncadd [#allocation3], 0
      %s772 = sshll.u32 %s2, 4
      %s773 = int_to_ptr.hbm [resolvable:$true] %s772
      %775 = dma.smem_to_hbm [#allocation2], 16, %s773, [#allocation3]
    $region13: #{tpu_custom_call.1} parent=1 // pred_fallthru
      _
    // Predicated region
    $region14: #{tpu_custom_call.1} parent=1 // pred_check
      _
    $region15: #{tpu_custom_call.1} parent=1 // pred_check_branch
      %777 = sbr.rel (0) target = $region17
    $region16: #{tpu_custom_call.1} parent=1 // pred_region
      %779 = dma.done [#allocation3], 16
    $region17: #{tpu_custom_call.1} parent=1 // pred_fallthru
      _
    %780 = sfence
    %781 = vsyncpa [#allocation3], 1

</llo_original>
